<compile_context>
chip_gen: v5e
topology: v5e:2x2
jax: 0.10.0
libtpu: 0.0.40
codegen_flags: <defaults>
</compile_context>

<pallas_src>
import jax
import jax.numpy as jnp
from jax.experimental import pallas as pl
from jax.experimental.pallas import tpu as pltpu


def ssm_kernel(z_ref, wt_ref, bt_ref, wo_ref, bo_ref, z_next_ref, x_pred_ref):
    # z: (TB, L), wt: (L, L), bt: (1, L), wo: (L, O), bo: (1, O)
    z = z_ref[...]
    bt = bt_ref[...]          # f32, read once per grid step
    bo = bo_ref[...]          # f32, read once per grid step

    # transition: z_next = z @ Wt + bt   (MXU matmul, f32 accumulate)
    z_next = jnp.dot(z, wt_ref[...], preferred_element_type=jnp.float32) + bt
    z_next_ref[...] = z_next.astype(z_next_ref.dtype)

    # observation: x_pred = z_next @ Wo + bo   (fused; no HBM round-trip of z_next)
    x_pred = jnp.dot(z_next.astype(wo_ref.dtype), wo_ref[...],
                     preferred_element_type=jnp.float32) + bo
    x_pred_ref[...] = x_pred.astype(x_pred_ref.dtype)


def _round_up(x, m):
    return ((x + m - 1) // m) * m


def state_space_model(z, w_t, b_t, w_o, b_o, *, block_batch=1024):
    """z: (B, L); w_t: (L, L); b_t: (L,); w_o: (O, L); b_o: (O,).

    Weights are PyTorch-convention (out, in); transposed to (in, out) here so
    the kernel does a plain `z @ W`. Biases are kept as (1, out) in f32.
    Returns (z_next, x_pred) exactly like the nn.Module forward.
    """
    B, L = z.shape
    O = w_o.shape[0]
    out_dtype = z.dtype

    wt_t = w_t.T                                   # (L, L), in->out layout
    wo_t = w_o.T                                   # (L, O)
    bt2 = b_t.reshape(1, L).astype(jnp.float32)
    bo2 = b_o.reshape(1, O).astype(jnp.float32)

    # Batch tile: large (HBM-roofline friendly) when B is big, otherwise one
    # sublane-aligned block covering the whole (padded) batch.
    if B >= block_batch:
        TB = block_batch
    else:
        TB = _round_up(max(B, 1), 8)
    B_pad = _round_up(B, TB)
    z_in = jnp.pad(z, ((0, B_pad - B), (0, 0))) if B_pad != B else z

    grid = (B_pad // TB,)

    itemsize = jnp.dtype(out_dtype).itemsize
    flops = 2 * B_pad * (L * L + L * O)
    bytes_accessed = (
        B_pad * L * jnp.dtype(z_in.dtype).itemsize        # z stream in
        + B_pad * (L + O) * itemsize                       # z_next + x_pred out
        + (L * L + L * O) * jnp.dtype(wt_t.dtype).itemsize # weights (once)
        + (L + O) * 4                                      # biases (once)
    )

    z_next, x_pred = pl.pallas_call(
        ssm_kernel,
        grid=grid,
        out_shape=(
            jax.ShapeDtypeStruct((B_pad, L), out_dtype),
            jax.ShapeDtypeStruct((B_pad, O), out_dtype),
        ),
        in_specs=[
            pl.BlockSpec((TB, L), lambda i: (i, 0)),   # z: streamed per tile
            pl.BlockSpec((L, L), lambda i: (0, 0)),    # W_t: resident
            pl.BlockSpec((1, L), lambda i: (0, 0)),    # b_t: resident
            pl.BlockSpec((L, O), lambda i: (0, 0)),    # W_o: resident
            pl.BlockSpec((1, O), lambda i: (0, 0)),    # b_o: resident
        ],
        out_specs=(
            pl.BlockSpec((TB, L), lambda i: (i, 0)),   # z_next
            pl.BlockSpec((TB, O), lambda i: (i, 0)),   # x_pred
        ),
        compiler_params=pltpu.CompilerParams(
            dimension_semantics=("parallel",),         # batch axis -> megacore on v7x
        ),
        cost_estimate=pl.CostEstimate(
            flops=flops, transcendentals=0, bytes_accessed=bytes_accessed),
    )(z_in, wt_t, bt2, wo_t, bo2)

    if B_pad != B:
        z_next = z_next[:B]
        x_pred = x_pred[:B]
    return z_next, x_pred


if __name__ == "__main__":
    # Small shapes consistent with the module: latent_dim=32, output_dim=16.
    LATENT, OUT = 32, 16

    key = jax.random.PRNGKey(0)
    k_z, k_wt, k_bt, k_wo, k_bo, k_z2 = jax.random.split(key, 6)

    # PyTorch nn.Linear shapes: weight=(out, in), bias=(out,)
    w_t = jax.random.normal(k_wt, (LATENT, LATENT), dtype=jnp.float32) * 0.1
    b_t = jax.random.normal(k_bt, (LATENT,), dtype=jnp.float32) * 0.1
    w_o = jax.random.normal(k_wo, (OUT, LATENT), dtype=jnp.float32) * 0.1
    b_o = jax.random.normal(k_bo, (OUT,), dtype=jnp.float32) * 0.1

    def ref(z):
        z_next = z @ w_t.T + b_t
        x_pred = z_next @ w_o.T + b_o
        return z_next, x_pred

    # Case 1: small batch (single block, grid of 1).
    B1 = 8
    z1 = jax.random.normal(k_z, (B1, LATENT), dtype=jnp.float32)
    z_next1, x_pred1 = state_space_model(z1, w_t, b_t, w_o, b_o)
    jax.block_until_ready((z_next1, x_pred1))
    zn_ref1, xp_ref1 = ref(z1)
    assert jnp.allclose(z_next1, zn_ref1, atol=1e-5, rtol=1e-5)
    assert jnp.allclose(x_pred1, xp_ref1, atol=1e-5, rtol=1e-5)

    # Case 2: larger, non-tile-aligned batch exercising the grid + padding path.
    B2 = 2500
    z2 = jax.random.normal(k_z2, (B2, LATENT), dtype=jnp.float32)
    z_next2, x_pred2 = state_space_model(z2, w_t, b_t, w_o, b_o)
    jax.block_until_ready((z_next2, x_pred2))
    zn_ref2, xp_ref2 = ref(z2)
    assert z_next2.shape == (B2, LATENT) and x_pred2.shape == (B2, OUT)
    assert jnp.allclose(z_next2, zn_ref2, atol=1e-5, rtol=1e-5)
    assert jnp.allclose(x_pred2, xp_ref2, atol=1e-5, rtol=1e-5)

    print("KERNEL_OK")
</pallas_src>

<mosaic_0001>
module attributes {stable_mosaic.version = 11 : i64} {
  func.func @ssm_kernel(%arg0: i32, %arg1: memref<8x32xf32, #tpu.memory_space<vmem>>, %arg2: memref<32x32xf32, #tpu.memory_space<vmem>>, %arg3: memref<1x32xf32, #tpu.memory_space<vmem>>, %arg4: memref<32x16xf32, #tpu.memory_space<vmem>>, %arg5: memref<1x16xf32, #tpu.memory_space<vmem>>, %arg6: memref<8x32xf32, #tpu.memory_space<vmem>>, %arg7: memref<8x16xf32, #tpu.memory_space<vmem>>) attributes {dimension_semantics = [#tpu.dimension_semantics<parallel>], iteration_bounds = array<i64: 1>, scalar_prefetch = 0 : i64, scratch_operands = 0 : i64, tpu.core_type = #tpu.core_type<tc>, window_params = [{transform_indices = @transform_0, window_bounds = array<i64: 8, 32>}, {pipeline_mode = #tpu.pipeline_mode<synchronous>, transform_indices = @transform_1, window_bounds = array<i64: 32, 32>}, {pipeline_mode = #tpu.pipeline_mode<synchronous>, transform_indices = @transform_2, window_bounds = array<i64: 1, 32>}, {pipeline_mode = #tpu.pipeline_mode<synchronous>, transform_indices = @transform_3, window_bounds = array<i64: 32, 16>}, {pipeline_mode = #tpu.pipeline_mode<synchronous>, transform_indices = @transform_4, window_bounds = array<i64: 1, 16>}, {transform_indices = @transform_5, window_bounds = array<i64: 8, 32>}, {transform_indices = @transform_6, window_bounds = array<i64: 8, 16>}]} {
    %c0 = arith.constant 0 : index
    %c0_0 = arith.constant 0 : index
    %0 = vector.load %arg1[%c0, %c0_0] : memref<8x32xf32, #tpu.memory_space<vmem>>, vector<8x32xf32>
    %c0_1 = arith.constant 0 : index
    %c0_2 = arith.constant 0 : index
    %1 = vector.load %arg3[%c0_1, %c0_2] : memref<1x32xf32, #tpu.memory_space<vmem>>, vector<1x32xf32>
    %c0_3 = arith.constant 0 : index
    %c0_4 = arith.constant 0 : index
    %2 = vector.load %arg5[%c0_3, %c0_4] : memref<1x16xf32, #tpu.memory_space<vmem>>, vector<1x16xf32>
    %c0_5 = arith.constant 0 : index
    %c0_6 = arith.constant 0 : index
    %3 = vector.load %arg2[%c0_5, %c0_6] : memref<32x32xf32, #tpu.memory_space<vmem>>, vector<32x32xf32>
    %cst = arith.constant dense<0.000000e+00> : vector<8x32xf32>
    %4 = tpu.matmul %0, %3, %cst {dimension_numbers = #tpu.dot_dimension_numbers<[1], [0], [0], [1], [0, 0, 1, 1], [], []>} : vector<8x32xf32>, vector<32x32xf32>, vector<8x32xf32> -> vector<8x32xf32>
    %5 = vector.broadcast %1 : vector<1x32xf32> to vector<8x32xf32>
    %6 = arith.addf %4, %5 : vector<8x32xf32>
    %c0_7 = arith.constant 0 : index
    %c0_8 = arith.constant 0 : index
    %7 = vector.load %arg6[%c0_7, %c0_8] : memref<8x32xf32, #tpu.memory_space<vmem>>, vector<8x32xf32>
    tpu.vector_store %arg6[%c0_7, %c0_8], %6 {strides = array<i32>} : memref<8x32xf32, #tpu.memory_space<vmem>>, vector<8x32xf32>,
    %c0_9 = arith.constant 0 : index
    %c0_10 = arith.constant 0 : index
    %8 = vector.load %arg4[%c0_9, %c0_10] : memref<32x16xf32, #tpu.memory_space<vmem>>, vector<32x16xf32>
    %cst_11 = arith.constant dense<0.000000e+00> : vector<8x16xf32>
    %9 = tpu.matmul %6, %8, %cst_11 {dimension_numbers = #tpu.dot_dimension_numbers<[1], [0], [0], [1], [0, 0, 1, 1], [], []>} : vector<8x32xf32>, vector<32x16xf32>, vector<8x16xf32> -> vector<8x16xf32>
    %10 = vector.broadcast %2 : vector<1x16xf32> to vector<8x16xf32>
    %11 = arith.addf %9, %10 : vector<8x16xf32>
    %c0_12 = arith.constant 0 : index
    %c0_13 = arith.constant 0 : index
    %12 = vector.load %arg7[%c0_12, %c0_13] : memref<8x16xf32, #tpu.memory_space<vmem>>, vector<8x16xf32>
    tpu.vector_store %arg7[%c0_12, %c0_13], %11 {strides = array<i32>} : memref<8x16xf32, #tpu.memory_space<vmem>>, vector<8x16xf32>,
    return
  }
  func.func @transform_0(%arg0: i32) -> (i32, i32) {
    %c0_i32 = arith.constant 0 : i32
    %c0_i32_0 = arith.constant 0 : i32
    return %arg0, %c0_i32 : i32, i32
  }
  func.func @transform_1(%arg0: i32) -> (i32, i32) {
    %c0_i32 = arith.constant 0 : i32
    %c0_i32_0 = arith.constant 0 : i32
    %c0_i32_1 = arith.constant 0 : i32
    return %c0_i32, %c0_i32_0 : i32, i32
  }
  func.func @transform_2(%arg0: i32) -> (i32, i32) {
    %c0_i32 = arith.constant 0 : i32
    %c0_i32_0 = arith.constant 0 : i32
    %c0_i32_1 = arith.constant 0 : i32
    return %c0_i32, %c0_i32_0 : i32, i32
  }
  func.func @transform_3(%arg0: i32) -> (i32, i32) {
    %c0_i32 = arith.constant 0 : i32
    %c0_i32_0 = arith.constant 0 : i32
    %c0_i32_1 = arith.constant 0 : i32
    return %c0_i32, %c0_i32_0 : i32, i32
  }
  func.func @transform_4(%arg0: i32) -> (i32, i32) {
    %c0_i32 = arith.constant 0 : i32
    %c0_i32_0 = arith.constant 0 : i32
    %c0_i32_1 = arith.constant 0 : i32
    return %c0_i32, %c0_i32_0 : i32, i32
  }
  func.func @transform_5(%arg0: i32) -> (i32, i32) {
    %c0_i32 = arith.constant 0 : i32
    %c0_i32_0 = arith.constant 0 : i32
    return %arg0, %c0_i32 : i32, i32
  }
  func.func @transform_6(%arg0: i32) -> (i32, i32) {
    %c0_i32 = arith.constant 0 : i32
    %c0_i32_0 = arith.constant 0 : i32
    return %arg0, %c0_i32 : i32, i32
  }
}

</mosaic_0001>

<llo_original>
// kernel: tpu_custom_call.1
$region0: #{tpu_custom_call.1}
  #allocation0 [shape = 'u32[]', space=smem, size = 0x4, offset = 0x4, fixed_abs, tag = 'smem constant byte address 0x4 - core index']
  #allocation1 [shape = 'u32[72,128]{1,0:T(1,128)}', space=vmem, size = 0x9000, scoped, tag = 'internal scratch']
  %s0 = inlined_call_operand.vmem [shape: f32[8,32], index: 0, kind: input, shape index: {}]
  %s1 = inlined_call_operand.vmem [shape: f32[32,32], index: 1, kind: input, shape index: {}]
  %s2 = inlined_call_operand.vmem [shape: f32[1,32], index: 2, kind: input, shape index: {}]
  %s3 = inlined_call_operand.vmem [shape: f32[32,16], index: 3, kind: input, shape index: {}]
  %s4 = inlined_call_operand.vmem [shape: f32[1,16], index: 4, kind: input, shape index: {}]
  %s5 = inlined_call_operand.hbm [shape: f32[8,32], index: 5, kind: output, shape index: {0}]
  %s6 = inlined_call_operand.hbm [shape: f32[8,16], index: 6, kind: output, shape index: {1}]
  %7 = xla_tuple %s5, %s6
  %s8 = sld [smem:[#allocation0]]
  $region38: #{tpu_custom_call.1} parent=0
    _
  %s10 = ssub.s32 1, %s8
  %s11 = scalar_select 0, %s10, %s8
  $region1: #{tpu_custom_call.1} parent=0
    #allocation2 [shape = 'u8[4096]{0}', space=vmem, size = 0x1000, scoped, tag = 'output window, operand 0, single buffered']
    #allocation3 [shape = 's32[1]{0}', space=sflag, size = 0x4, scoped, tag = 'scoped memory for tpu_custom_call.1']
    #allocation4 [shape = 'u8[4096]{0}', space=vmem, size = 0x1000, scoped, tag = 'output window, operand 1, single buffered']
    #allocation5 [shape = 's32[1]{0}', space=sflag, size = 0x4, scoped, tag = 'scoped memory for tpu_custom_call.1']
    %12 = vsyncpa [#allocation3], 0
    %13 = vsyncpa [#allocation5], 0
    // Predicated region
    $region2: #{tpu_custom_call.1} parent=1 // pred_check
      _
    $region3: #{tpu_custom_call.1} parent=1 // pred_check_branch
      %15 = sbr.rel (0) target = $region5
    $region4: #{tpu_custom_call.1} parent=1 // pred_region
      _
    $region5: #{tpu_custom_call.1} parent=1 // pred_fallthru
      _
    // Predicated region
    $region6: #{tpu_custom_call.1} parent=1 // pred_check
      _
    $region7: #{tpu_custom_call.1} parent=1 // pred_check_branch
      %17 = sbr.rel (0) target = $region9
    $region8: #{tpu_custom_call.1} parent=1 // pred_region
      _
    $region9: #{tpu_custom_call.1} parent=1 // pred_fallthru
      _
    // Predicated region
    $region10: #{tpu_custom_call.1} parent=1 // pred_check
      _
    $region11: #{tpu_custom_call.1} parent=1 // pred_check_branch
      %19 = sbr.rel (0) target = $region13
    $region12: #{tpu_custom_call.1} parent=1 // pred_region
      _
    $region13: #{tpu_custom_call.1} parent=1 // pred_fallthru
      _
    // Predicated region
    $region14: #{tpu_custom_call.1} parent=1 // pred_check
      _
    $region15: #{tpu_custom_call.1} parent=1 // pred_check_branch
      %21 = sbr.rel (0) target = $region17
    $region16: #{tpu_custom_call.1} parent=1 // pred_region
      _
    $region17: #{tpu_custom_call.1} parent=1 // pred_fallthru
      _
    // Predicated region
    $region18: #{tpu_custom_call.1} parent=1 // pred_check
      _
    $region19: #{tpu_custom_call.1} parent=1 // pred_check_branch
      %23 = sbr.rel (0) target = $region21
    $region20: #{tpu_custom_call.1} parent=1 // pred_region
      _
    $region21: #{tpu_custom_call.1} parent=1 // pred_fallthru
      _
    %v24 = vld [vmem:[%s0] sm:$0xff]
    %v25 = vld [vmem:[%s2] sm:$0x1]
    %v26 = vld [vmem:[%s4] sm:$0x1]
    %v27 = vld [vmem:[%s1] sm:$0xff]
    %v28 = vld [vmem:[%s1 + $0x8] sm:$0xff]
    %v29 = vld [vmem:[%s1 + $0x10] sm:$0xff]
    %v30 = vld [vmem:[%s1 + $0x18] sm:$0xff]
    %v32 = vperm.slane %v25, 0
    %vm34 = vcmask 261120
    %v36 = vsel %vm34, %v24, 0
    %38 = vmatpush.msra.mxu0 0.0
    %39 = vmatpush.msra.mxu0 0.0
    %40 = vmatpush.msra.mxu0 0.0
    %41 = vmatpush.msra.mxu0 0.0
    %42 = vmatpush.msra.mxu0 0.0
    %43 = vmatpush.msra.mxu0 0.0
    %44 = vmatpush.msra.mxu0 0.0
    %45 = vmatpush.msra.mxu0 0.0
    %46 = vmatpush.msra.mxu0 0.0
    %47 = vmatpush.msra.mxu0 0.0
    %48 = vmatpush.msra.mxu0 0.0
    %49 = vmatpush.msra.mxu0 0.0
    %50 = vmatpush.msra.mxu0 %v30
    %51 = vmatpush.msra.mxu0 %v29
    %52 = vmatpush.msra.mxu0 %v28
    %53 = vmatpush.msra.mxu0 %v27
    %54 = vmatmul.f32.gmra.mxu0 %v36
    %v55 = vpop.f32.mrf.mxu0
    %v56 = vadd.f32 %v32, %v55
    %57 = vdwg.mxu0
    %58 = vst.msk [vmem:[#allocation2] sm:$0xff] %vm34, %v56
    %v59 = vld [vmem:[%s3] sm:$0xff]
    %v60 = vld [vmem:[%s3 + $0x8] sm:$0xff]
    %v61 = vld [vmem:[%s3 + $0x10] sm:$0xff]
    %v62 = vld [vmem:[%s3 + $0x18] sm:$0xff]
    %v64 = vperm.slane %v26, 0
    %v67 = vsel %vm34, %v56, 0
    %69 = vmatpush.msra.mxu0 0.0
    %70 = vmatpush.msra.mxu0 0.0
    %71 = vmatpush.msra.mxu0 0.0
    %72 = vmatpush.msra.mxu0 0.0
    %73 = vmatpush.msra.mxu0 0.0
    %74 = vmatpush.msra.mxu0 0.0
    %75 = vmatpush.msra.mxu0 0.0
    %76 = vmatpush.msra.mxu0 0.0
    %77 = vmatpush.msra.mxu0 0.0
    %78 = vmatpush.msra.mxu0 0.0
    %79 = vmatpush.msra.mxu0 0.0
    %80 = vmatpush.msra.mxu0 0.0
    %81 = vmatpush.msra.mxu0 %v62
    %82 = vmatpush.msra.mxu0 %v61
    %83 = vmatpush.msra.mxu0 %v60
    %84 = vmatpush.msra.mxu0 %v59
    %85 = vmatmul.f32.gmra.mxu0 %v67
    %v86 = vpop.f32.mrf.mxu0
    %v87 = vadd.f32 %v64, %v86
    %88 = vdwg.mxu0
    %vm89 = vcmask 130048
    %90 = vst.msk [vmem:[#allocation4] sm:$0xff] %vm89, %v87
    // Predicated region
    $region22: #{tpu_custom_call.1} parent=1 // pred_check
      _
    $region23: #{tpu_custom_call.1} parent=1 // pred_check_branch
      %92 = sbr.rel (0) target = $region25
    $region24: #{tpu_custom_call.1} parent=1 // pred_region
      %94 = vsyncadd [#allocation3], 0
      %s96 = sshll.u32 [#allocation2], 4
      %s97 = int_to_ptr.vmem [resolvable:$true] %s96
      %s98 = sshll.u32 %s5, 4
      %s99 = int_to_ptr.hbm [resolvable:$true] %s98
      %101 = dma.vmem_to_hbm [thread:$0]  %s97, 128, %s99, [#allocation3]
    $region25: #{tpu_custom_call.1} parent=1 // pred_fallthru
      _
    // Predicated region
    $region26: #{tpu_custom_call.1} parent=1 // pred_check
      _
    $region27: #{tpu_custom_call.1} parent=1 // pred_check_branch
      %103 = sbr.rel (0) target = $region29
    $region28: #{tpu_custom_call.1} parent=1 // pred_region
      %105 = vsyncadd [#allocation5], 0
      %s107 = sshll.u32 [#allocation4], 4
      %s108 = int_to_ptr.vmem [resolvable:$true] %s107
      %s109 = sshll.u32 %s6, 4
      %s110 = int_to_ptr.hbm [resolvable:$true] %s109
      %112 = dma.vmem_to_hbm [thread:$0]  %s108, 128, %s110, [#allocation5]
    $region29: #{tpu_custom_call.1} parent=1 // pred_fallthru
      _
    // Predicated region
    $region30: #{tpu_custom_call.1} parent=1 // pred_check
      _
    $region31: #{tpu_custom_call.1} parent=1 // pred_check_branch
      %114 = sbr.rel (0) target = $region33
    $region32: #{tpu_custom_call.1} parent=1 // pred_region
      %116 = dma.done [#allocation3], 128
    $region33: #{tpu_custom_call.1} parent=1 // pred_fallthru
      _
    // Predicated region
    $region34: #{tpu_custom_call.1} parent=1 // pred_check
      _
    $region35: #{tpu_custom_call.1} parent=1 // pred_check_branch
      %118 = sbr.rel (0) target = $region37
    $region36: #{tpu_custom_call.1} parent=1 // pred_region
      %120 = dma.done [#allocation5], 128
    $region37: #{tpu_custom_call.1} parent=1 // pred_fallthru
      _
    %121 = vsyncpa [#allocation3], 1
    %122 = vsyncpa [#allocation5], 1

</llo_original>
